<compile_context>
chip_gen: v7x
topology: tpu7x:2x2x1
jax: 0.10.0
libtpu: 0.0.40
codegen_flags: <defaults>
</compile_context>

<pallas_src>
import functools

import jax
import jax.numpy as jnp
from jax import lax
from jax.experimental import pallas as pl
from jax.experimental.pallas import tpu as pltpu

BN_EPS = 1e-5
_VMEM_LIMIT = 32 * 1024 * 1024  # explicit, safe on v5e (16 MiB default) and v7x (64 MiB)


# ----------------------------------------------------------------------------
# Pass 1: conv (Toeplitz-packed matmul) + per-tile BN partial sums
# ----------------------------------------------------------------------------
def conv_stats_kernel(x_ref, w_ref, conv_ref, stats_ref, *, H, KH):
    """One batch element per grid step.

    x_ref:     (H+2*pad, (W+2*pad)*Ci)   bf16, lane-packed padded input rows
    w_ref:     (KH, (W+2*pad)*Ci, W*Co)  bf16, banded (Toeplitz) weight
    conv_ref:  (H, W*Co)                 f32, lane-dense conv output
    stats_ref: (2, W*Co)                 f32, per-(w,co) [sum; sum of squares]
    """
    # kw taps + input channels are folded into the contraction (K = (W+2)*Ci);
    # kh is a 3-term f32 accumulation -> 3 MXU pushes total, bf16 operands.
    acc = jnp.dot(x_ref[0:H, :], w_ref[0], preferred_element_type=jnp.float32)
    for kh in range(1, KH):
        acc = acc + jnp.dot(x_ref[kh:kh + H, :], w_ref[kh],
                            preferred_element_type=jnp.float32)

    conv_ref[...] = acc                                   # lane-dense (H, 128) store

    # single sweep over acc: per-lane sum and sum-of-squares (finalized outside)
    s = jnp.sum(acc, axis=0, keepdims=True)               # (1, W*Co)
    sq = jnp.sum(acc * acc, axis=0, keepdims=True)        # (1, W*Co)
    stats_ref[...] = jnp.concatenate([s, sq], axis=0)     # (2, W*Co)


# ----------------------------------------------------------------------------
# Pass 2: normalize (pre-folded scale/shift -> one FMA) + hardswish
# ----------------------------------------------------------------------------
def bn_hs_kernel(conv_ref, scale_ref, shift_ref, o_ref):
    """conv_ref/o_ref: (TM, W*Co) f32 ; scale_ref/shift_ref: (1, W*Co) f32."""
    y = conv_ref[...] * scale_ref[...] + shift_ref[...]
    o_ref[...] = y * jnp.clip(y + 3.0, 0.0, 6.0) * (1.0 / 6.0)


# ----------------------------------------------------------------------------
# Wrapper
# ----------------------------------------------------------------------------
def _toeplitz_weight(w_hwio, W):
    """(KH, KW, Ci, Co) -> (KH, (W+KW-1)*Ci, W*Co) banded matrix.

    Wb[kh, wp*Ci + ci, w*Co + co] = w[kh, wp - w, ci, co]  (0 elsewhere)
    so that  conv[h, w, co] = sum_kh  x_pad_row[h+kh, :] @ Wb[kh]  directly in the
    lane-dense (W*Co) output layout.
    """
    KH, KW, Ci, Co = w_hwio.shape
    Wp = W + KW - 1
    wp = jnp.arange(Wp)
    wo = jnp.arange(W)
    kw = wp[:, None] - wo[None, :]                       # (Wp, W)
    valid = (kw >= 0) & (kw < KW)
    g = w_hwio[:, jnp.clip(kw, 0, KW - 1)]               # (KH, Wp, W, Ci, Co)
    g = jnp.where(valid[None, :, :, None, None], g, 0.0)
    g = jnp.transpose(g, (0, 1, 3, 2, 4))                # (KH, Wp, Ci, W, Co)
    return g.reshape(KH, Wp * Ci, W * Co)


def conv_bn_hs(x_nchw, weight_oihw, gamma, beta, *, eps=BN_EPS,
               matmul_dtype=jnp.bfloat16, row_tile=16):
    """x_nchw: (N, Ci, H, W), weight_oihw: (Co, Ci, KH, KW) (PyTorch layout)."""
    N, Ci, H, W = x_nchw.shape
    Co, _, KH, KW = weight_oihw.shape
    pad = (KH - 1) // 2
    Hp, Wp = H + 2 * pad, W + 2 * pad
    WCo = W * Co

    # --- layout glue (interface stays NCHW like the PyTorch module) ----------
    x_nhwc = jnp.transpose(x_nchw, (0, 2, 3, 1))
    x_pad = jnp.pad(x_nhwc, ((0, 0), (pad, pad), (pad, pad), (0, 0)))
    x_rows = x_pad.reshape(N, Hp, Wp * Ci).astype(matmul_dtype)   # (N, Hp, Wp*Ci)

    w_hwio = jnp.transpose(weight_oihw, (2, 3, 1, 0)).astype(jnp.float32)
    w_big = _toeplitz_weight(w_hwio, W).astype(matmul_dtype)      # (KH, Wp*Ci, W*Co)

    # --- pass 1: conv + partial BN stats (grid over batch, fully parallel) ---
    conv_flat, stats = pl.pallas_call(
        functools.partial(conv_stats_kernel, H=H, KH=KH),
        grid=(N,),
        in_specs=(
            pl.BlockSpec((None, Hp, Wp * Ci), lambda n: (n, 0, 0)),
            pl.BlockSpec((KH, Wp * Ci, WCo), lambda n: (0, 0, 0)),
        ),
        out_specs=(
            pl.BlockSpec((None, H, WCo), lambda n: (n, 0, 0)),
            pl.BlockSpec((None, 2, WCo), lambda n: (n, 0, 0)),
        ),
        out_shape=(
            jax.ShapeDtypeStruct((N, H, WCo), jnp.float32),
            jax.ShapeDtypeStruct((N, 2, WCo), jnp.float32),
        ),
        compiler_params=pltpu.CompilerParams(
            dimension_semantics=("parallel",),
            vmem_limit_bytes=_VMEM_LIMIT),
    )(x_rows, w_big)

    # --- tiny stats finalization (2 KiB of data): mean/var -> folded affine --
    cnt = jnp.float32(N * H * W)
    tot = jnp.sum(stats.reshape(N, 2, W, Co), axis=(0, 2))        # (2, Co)
    mean = tot[0] / cnt
    var = jnp.maximum(tot[1] / cnt - mean * mean, 0.0)            # biased (train-mode)
    inv = lax.rsqrt(var + eps)
    scale = gamma.astype(jnp.float32) * inv                       # (Co,)
    shift = beta.astype(jnp.float32) - mean * scale
    scale_row = jnp.tile(scale[None, :], (W, 1)).reshape(1, WCo)  # lane l -> scale[l%Co]
    shift_row = jnp.tile(shift[None, :], (W, 1)).reshape(1, WCo)

    # --- pass 2: normalize + hardswish over lane-dense row tiles -------------
    M = N * H
    conv2d = conv_flat.reshape(M, WCo)                            # free reshape
    tm = row_tile if (M % row_tile == 0 and row_tile % 8 == 0) else M
    out2 = pl.pallas_call(
        bn_hs_kernel,
        grid=(M // tm,),
        in_specs=(
            pl.BlockSpec((tm, WCo), lambda i: (i, 0)),
            pl.BlockSpec((1, WCo), lambda i: (0, 0)),
            pl.BlockSpec((1, WCo), lambda i: (0, 0)),
        ),
        out_specs=pl.BlockSpec((tm, WCo), lambda i: (i, 0)),
        out_shape=jax.ShapeDtypeStruct((M, WCo), jnp.float32),
        compiler_params=pltpu.CompilerParams(
            dimension_semantics=("parallel",),
            vmem_limit_bytes=_VMEM_LIMIT),
    )(conv2d, scale_row, shift_row)

    # back to PyTorch's NCHW
    out_nhwc = out2.reshape(N, H, W, Co)
    return jnp.transpose(out_nhwc, (0, 3, 1, 2))


# ----------------------------------------------------------------------------
# Pure-JAX reference (PyTorch semantics, NCHW)
# ----------------------------------------------------------------------------
def conv_bn_hs_reference(x_nchw, weight_oihw, gamma, beta, *, eps=BN_EPS,
                         matmul_dtype=jnp.float32):
    KH = weight_oihw.shape[2]
    pad = (KH - 1) // 2
    conv = lax.conv_general_dilated(
        x_nchw.astype(matmul_dtype), weight_oihw.astype(matmul_dtype),
        window_strides=(1, 1),
        padding=[(pad, pad), (pad, pad)],
        dimension_numbers=("NCHW", "OIHW", "NCHW"),
        preferred_element_type=jnp.float32)
    mean = jnp.mean(conv, axis=(0, 2, 3), keepdims=True)
    var = jnp.mean((conv - mean) ** 2, axis=(0, 2, 3), keepdims=True)   # biased
    y = (conv - mean) * lax.rsqrt(var + eps)
    y = y * gamma.reshape(1, -1, 1, 1) + beta.reshape(1, -1, 1, 1)
    return y * jnp.clip(y + 3.0, 0.0, 6.0) / 6.0


if __name__ == "__main__":
    # ConvBnHs(ci=4, co=8, k=3, s=1)  ->  p = (k-1)//2 = 1, bias=False
    N, Ci, H, W = 2, 4, 16, 16
    Co, K = 8, 3

    key = jax.random.PRNGKey(0)
    kx, kw = jax.random.split(key)
    x = jax.random.normal(kx, (N, Ci, H, W), dtype=jnp.float32)
    weight = jax.random.normal(kw, (Co, Ci, K, K), dtype=jnp.float32) * 0.1
    gamma = jnp.ones((Co,), jnp.float32)       # BatchNorm2d defaults
    beta = jnp.zeros((Co,), jnp.float32)

    out = jax.block_until_ready(conv_bn_hs(x, weight, gamma, beta))
    assert out.shape == (N, Co, H, W), out.shape

    # strict check vs. a reference using the same bf16 matmul operands
    ref_bf16 = conv_bn_hs_reference(x, weight, gamma, beta, matmul_dtype=jnp.bfloat16)
    err_b = float(jnp.max(jnp.abs(out - ref_bf16)))
    assert jnp.allclose(out, ref_bf16, atol=1e-3, rtol=1e-3), err_b

    # sanity check vs. the full-f32 PyTorch-semantics reference
    ref_f32 = conv_bn_hs_reference(x, weight, gamma, beta, matmul_dtype=jnp.float32)
    err_f = float(jnp.max(jnp.abs(out - ref_f32)))
    assert jnp.allclose(out, ref_f32, atol=6e-2, rtol=6e-2), err_f

    print("KERNEL_OK")
</pallas_src>

<mosaic_0001>
module attributes {stable_mosaic.version = 11 : i64} {
  func.func @conv_stats_kernel(%arg0: i32, %arg1: memref<1x18x72xbf16, #tpu.memory_space<vmem>>, %arg2: memref<3x72x128xbf16, #tpu.memory_space<vmem>>, %arg3: memref<1x16x128xf32, #tpu.memory_space<vmem>>, %arg4: memref<1x2x128xf32, #tpu.memory_space<vmem>>) attributes {dimension_semantics = [#tpu.dimension_semantics<parallel>], iteration_bounds = array<i64: 2>, scalar_prefetch = 0 : i64, scratch_operands = 0 : i64, tpu.core_type = #tpu.core_type<tc>, window_params = [{transform_indices = @transform_0, window_bounds = array<i64: 1, 18, 72>}, {pipeline_mode = #tpu.pipeline_mode<synchronous>, transform_indices = @transform_1, window_bounds = array<i64: 3, 72, 128>}, {transform_indices = @transform_2, window_bounds = array<i64: 1, 16, 128>}, {transform_indices = @transform_3, window_bounds = array<i64: 1, 2, 128>}]} {
    %c0 = arith.constant 0 : index
    %c0_0 = arith.constant 0 : index
    %c0_1 = arith.constant 0 : index
    %0 = vector.load %arg1[%c0, %c0_0, %c0_1] : memref<1x18x72xbf16, #tpu.memory_space<vmem>>, vector<1x16x72xbf16>
    %1 = vector.shape_cast %0 : vector<1x16x72xbf16> to vector<16x72xbf16>
    %c0_2 = arith.constant 0 : index
    %c0_3 = arith.constant 0 : index
    %c0_4 = arith.constant 0 : index
    %2 = vector.load %arg2[%c0_2, %c0_3, %c0_4] : memref<3x72x128xbf16, #tpu.memory_space<vmem>>, vector<1x72x128xbf16>
    %3 = vector.shape_cast %2 : vector<1x72x128xbf16> to vector<72x128xbf16>
    %cst = arith.constant dense<0.000000e+00> : vector<16x128xf32>
    %4 = tpu.matmul %1, %3, %cst {dimension_numbers = #tpu.dot_dimension_numbers<[1], [0], [0], [1], [0, 0, 1, 1], [], []>} : vector<16x72xbf16>, vector<72x128xbf16>, vector<16x128xf32> -> vector<16x128xf32>
    %c0_5 = arith.constant 0 : index
    %c1 = arith.constant 1 : index
    %c0_6 = arith.constant 0 : index
    %5 = vector.load %arg1[%c0_5, %c1, %c0_6] : memref<1x18x72xbf16, #tpu.memory_space<vmem>>, vector<1x16x72xbf16>
    %6 = vector.shape_cast %5 : vector<1x16x72xbf16> to vector<16x72xbf16>
    %c1_7 = arith.constant 1 : index
    %c0_8 = arith.constant 0 : index
    %c0_9 = arith.constant 0 : index
    %7 = vector.load %arg2[%c1_7, %c0_8, %c0_9] : memref<3x72x128xbf16, #tpu.memory_space<vmem>>, vector<1x72x128xbf16>
    %8 = vector.shape_cast %7 : vector<1x72x128xbf16> to vector<72x128xbf16>
    %cst_10 = arith.constant dense<0.000000e+00> : vector<16x128xf32>
    %9 = tpu.matmul %6, %8, %cst_10 {dimension_numbers = #tpu.dot_dimension_numbers<[1], [0], [0], [1], [0, 0, 1, 1], [], []>} : vector<16x72xbf16>, vector<72x128xbf16>, vector<16x128xf32> -> vector<16x128xf32>
    %10 = arith.addf %4, %9 : vector<16x128xf32>
    %c0_11 = arith.constant 0 : index
    %c2 = arith.constant 2 : index
    %c0_12 = arith.constant 0 : index
    %11 = vector.load %arg1[%c0_11, %c2, %c0_12] : memref<1x18x72xbf16, #tpu.memory_space<vmem>>, vector<1x16x72xbf16>
    %12 = vector.shape_cast %11 : vector<1x16x72xbf16> to vector<16x72xbf16>
    %c2_13 = arith.constant 2 : index
    %c0_14 = arith.constant 0 : index
    %c0_15 = arith.constant 0 : index
    %13 = vector.load %arg2[%c2_13, %c0_14, %c0_15] : memref<3x72x128xbf16, #tpu.memory_space<vmem>>, vector<1x72x128xbf16>
    %14 = vector.shape_cast %13 : vector<1x72x128xbf16> to vector<72x128xbf16>
    %cst_16 = arith.constant dense<0.000000e+00> : vector<16x128xf32>
    %15 = tpu.matmul %12, %14, %cst_16 {dimension_numbers = #tpu.dot_dimension_numbers<[1], [0], [0], [1], [0, 0, 1, 1], [], []>} : vector<16x72xbf16>, vector<72x128xbf16>, vector<16x128xf32> -> vector<16x128xf32>
    %16 = arith.addf %10, %15 : vector<16x128xf32>
    %c0_17 = arith.constant 0 : index
    %c0_18 = arith.constant 0 : index
    %c0_19 = arith.constant 0 : index
    %17 = vector.load %arg3[%c0_17, %c0_18, %c0_19] : memref<1x16x128xf32, #tpu.memory_space<vmem>>, vector<1x16x128xf32>
    %18 = vector.shape_cast %17 : vector<1x16x128xf32> to vector<16x128xf32>
    %19 = vector.shape_cast %16 : vector<16x128xf32> to vector<1x16x128xf32>
    tpu.vector_store %arg3[%c0_17, %c0_18, %c0_19], %19 {strides = array<i32>} : memref<1x16x128xf32, #tpu.memory_space<vmem>>, vector<1x16x128xf32>,
    %cst_20 = arith.constant dense<0.000000e+00> : vector<128xf32>
    %20 = vector.multi_reduction <add>, %16, %cst_20 [0] : vector<16x128xf32> to vector<128xf32>
    %21 = vector.shape_cast %20 : vector<128xf32> to vector<1x128xf32>
    %22 = arith.mulf %16, %16 : vector<16x128xf32>
    %cst_21 = arith.constant dense<0.000000e+00> : vector<128xf32>
    %23 = vector.multi_reduction <add>, %22, %cst_21 [0] : vector<16x128xf32> to vector<128xf32>
    %24 = vector.shape_cast %23 : vector<128xf32> to vector<1x128xf32>
    %25 = tpu.concatenate %21, %24 in 0 : vector<1x128xf32>, vector<1x128xf32> -> vector<2x128xf32>
    %c0_22 = arith.constant 0 : index
    %c0_23 = arith.constant 0 : index
    %c0_24 = arith.constant 0 : index
    %26 = vector.load %arg4[%c0_22, %c0_23, %c0_24] : memref<1x2x128xf32, #tpu.memory_space<vmem>>, vector<1x2x128xf32>
    %27 = vector.shape_cast %26 : vector<1x2x128xf32> to vector<2x128xf32>
    %28 = vector.shape_cast %25 : vector<2x128xf32> to vector<1x2x128xf32>
    tpu.vector_store %arg4[%c0_22, %c0_23, %c0_24], %28 {strides = array<i32>} : memref<1x2x128xf32, #tpu.memory_space<vmem>>, vector<1x2x128xf32>,
    return
  }
  func.func @transform_0(%arg0: i32) -> (i32, i32, i32) {
    %c0_i32 = arith.constant 0 : i32
    %c0_i32_0 = arith.constant 0 : i32
    %c0_i32_1 = arith.constant 0 : i32
    return %arg0, %c0_i32, %c0_i32_0 : i32, i32, i32
  }
  func.func @transform_1(%arg0: i32) -> (i32, i32, i32) {
    %c0_i32 = arith.constant 0 : i32
    %c0_i32_0 = arith.constant 0 : i32
    %c0_i32_1 = arith.constant 0 : i32
    %c0_i32_2 = arith.constant 0 : i32
    return %c0_i32, %c0_i32_0, %c0_i32_1 : i32, i32, i32
  }
  func.func @transform_2(%arg0: i32) -> (i32, i32, i32) {
    %c0_i32 = arith.constant 0 : i32
    %c0_i32_0 = arith.constant 0 : i32
    %c0_i32_1 = arith.constant 0 : i32
    return %arg0, %c0_i32, %c0_i32_0 : i32, i32, i32
  }
  func.func @transform_3(%arg0: i32) -> (i32, i32, i32) {
    %c0_i32 = arith.constant 0 : i32
    %c0_i32_0 = arith.constant 0 : i32
    %c0_i32_1 = arith.constant 0 : i32
    return %arg0, %c0_i32, %c0_i32_0 : i32, i32, i32
  }
}

</mosaic_0001>

<llo_original>
// kernel: tpu_custom_call.1
$region0: #{tpu_custom_call.1}
  #allocation0 [shape = 'u32[]', space=smem, size = 0x4, offset = 0x4, fixed_abs, tag = 'smem constant byte address 0x4 - core index']
  #allocation1 [shape = 'u32[144,128]{1,0:T(1,128)}', space=vmem, size = 0x12000, scoped, tag = 'internal scratch']
  %s0 = inlined_call_operand.vmem [shape: bf16[2,18,72], index: 0, kind: input, shape index: {}]
  %s1 = inlined_call_operand.hbm [shape: bf16[3,72,128], index: 1, kind: input, shape index: {}]
  %s2 = inlined_call_operand.hbm [shape: f32[2,16,128], index: 2, kind: output, shape index: {0}]
  %s3 = inlined_call_operand.hbm [shape: f32[2,2,128], index: 3, kind: output, shape index: {1}]
  %4 = xla_tuple %s2, %s3
  %s5 = sld [smem:[#allocation0]]
  $region53: #{tpu_custom_call.1} parent=0
    _
  %s7 = ssub.s32 1, %s5
  %s8 = scalar_select 0, %s7, %s5
  $region1: #{tpu_custom_call.1} parent=0
    #allocation2 [shape = 'u8[55296]{0}', space=vmem, size = 0xd800, scoped, tag = 'input window, operand 1, single buffered']
    #allocation3 [shape = 's32[2]{0}', space=sflag, size = 0x8, scoped, tag = 'scoped memory for tpu_custom_call.1']
    #allocation4 [shape = 's32[2]{0}', space=sflag, size = 0x8, scoped, tag = 'scoped memory for tpu_custom_call.1']
    #allocation5 [shape = 'u8[16384]{0}', space=vmem, size = 0x4000, scoped, tag = 'output window, operand 0']
    #allocation6 [shape = 'u8[2048]{0}', space=vmem, size = 0x800, scoped, tag = 'output window, operand 1']
    #allocation7 [shape = 's32[2]{0}', space=sflag, size = 0x8, scoped, tag = 'scoped memory for tpu_custom_call.1']
    %9 = vsyncpa [#allocation3], 0
    %10 = vsyncpa [#allocation4], 0
    %s11 = scalar_lea.sflag [#allocation4], 1
    %12 = vsyncpa %s11, 0
    %13 = vsyncpa [#allocation7], 0
    %s14 = scalar_lea.sflag [#allocation7], 1
    %15 = vsyncpa %s14, 0
    loop: start=0, step=1, limit=4
    $region2: #{tpu_custom_call.1} parent=1 // loop_pre_header
      _
    $region3: #{tpu_custom_call.1} parent=1 // loop_header
      %s17 = sphi 0, %s21
      %p18 = scmp.ge.s32.totalorder %s17, 4
      %s27 = sphi 0, %s29
      %s30 = sphi 0, %s27
      %s31 = sphi 0, %s30
      %s47 = sphi 0, %s31
      %s51 = sphi 0, %s51
      %s53 = sphi 0, %s51
      %s54 = sphi 0, %s53
      %s68 = sphi 0, %s54
      %s74 = sphi 0, %s76
      %s77 = sphi 0, %s74
      %s78 = sphi 0, %s77
      %s94 = sphi 0, %s78
      %s100 = sphi 0, %s102
      %s103 = sphi 0, %s100
      %s104 = sphi 0, %s103
      %s120 = sphi 0, %s104
    $region4: #{tpu_custom_call.1} parent=1 // loop_header_branch
      %20 = sbr.rel (%p18) target = $region8
    $region5: #{tpu_custom_call.1} parent=1 // loop_body
      %s22 = ssub.s32 %s17, 1
      %s23 = ssub.s32 %s17, 2
      %s24 = sadd.s32 %s17, 1
      %s25 = ssub.s32 %s17, %s24
      %p26 = scmp.eq.s32.totalorder %s25, 0
      %s28 = sadd.s32 %s27, 1
      %s29 = scalar_select %p26, %s27, %s28
      %p32 = pneg %p26
      %p33 = scmp.eq.s32.totalorder %s17, 1
      %p34 = por %p32, %p33
      %p35 = scmp.ne.s32.totalorder %s27, %s30
      %p36 = scmp.eq.s32.totalorder %s17, 0
      %p37 = por %p35, %p36
      %p38 = scmp.ne.s32.totalorder %s27, %s30
      %p39 = scmp.eq.s32.totalorder %s22, 1
      %p40 = por %p38, %p39
      %p41 = scmp.ne.s32.totalorder %s30, %s31
      %p42 = scmp.eq.s32.totalorder %s22, 0
      %p43 = por %p41, %p42
      %p44 = scmp.ne.s32.totalorder %s30, %s31
      %p45 = scmp.eq.s32.totalorder %s23, 1
      %p46 = por %p44, %p45
      %p48 = scmp.ne.s32.totalorder %s31, %s47
      %p49 = scmp.eq.s32.totalorder %s23, 0
      %p50 = por %p48, %p49
      %s52 = sadd.s32 %s51, 1
      %p55 = scmp.eq.s32.totalorder %s17, 1
      %p56 = scmp.ne.s32.totalorder %s51, %s53
      %p57 = scmp.eq.s32.totalorder %s17, 0
      %p58 = por %p56, %p57
      %p59 = scmp.ne.s32.totalorder %s51, %s53
      %p60 = scmp.eq.s32.totalorder %s22, 1
      %p61 = por %p59, %p60
      %p62 = scmp.ne.s32.totalorder %s53, %s54
      %p63 = scmp.eq.s32.totalorder %s22, 0
      %p64 = por %p62, %p63
      %p65 = scmp.ne.s32.totalorder %s53, %s54
      %p66 = scmp.eq.s32.totalorder %s23, 1
      %p67 = por %p65, %p66
      %p69 = scmp.ne.s32.totalorder %s54, %s68
      %p70 = scmp.eq.s32.totalorder %s23, 0
      %p71 = por %p69, %p70
      %s72 = ssub.s32 %s17, %s24
      %p73 = scmp.eq.s32.totalorder %s72, 0
      %s75 = sadd.s32 %s74, 1
      %s76 = scalar_select %p73, %s74, %s75
      %p79 = pneg %p73
      %p80 = scmp.eq.s32.totalorder %s17, 1
      %p81 = por %p79, %p80
      %p82 = scmp.ne.s32.totalorder %s74, %s77
      %p83 = scmp.eq.s32.totalorder %s17, 0
      %p84 = por %p82, %p83
      %p85 = scmp.ne.s32.totalorder %s74, %s77
      %p86 = scmp.eq.s32.totalorder %s22, 1
      %p87 = por %p85, %p86
      %p88 = scmp.ne.s32.totalorder %s77, %s78
      %p89 = scmp.eq.s32.totalorder %s22, 0
      %p90 = por %p88, %p89
      %p91 = scmp.ne.s32.totalorder %s77, %s78
      %p92 = scmp.eq.s32.totalorder %s23, 1
      %p93 = por %p91, %p92
      %p95 = scmp.ne.s32.totalorder %s78, %s94
      %p96 = scmp.eq.s32.totalorder %s23, 0
      %p97 = por %p95, %p96
      %s98 = ssub.s32 %s17, %s24
      %p99 = scmp.eq.s32.totalorder %s98, 0
      %s101 = sadd.s32 %s100, 1
      %s102 = scalar_select %p99, %s100, %s101
      %p105 = pneg %p99
      %p106 = scmp.eq.s32.totalorder %s17, 1
      %p107 = por %p105, %p106
      %p108 = scmp.ne.s32.totalorder %s100, %s103
      %p109 = scmp.eq.s32.totalorder %s17, 0
      %p110 = por %p108, %p109
      %p111 = scmp.ne.s32.totalorder %s100, %s103
      %p112 = scmp.eq.s32.totalorder %s22, 1
      %p113 = por %p111, %p112
      %p114 = scmp.ne.s32.totalorder %s103, %s104
      %p115 = scmp.eq.s32.totalorder %s22, 0
      %p116 = por %p114, %p115
      %p117 = scmp.ne.s32.totalorder %s103, %s104
      %p118 = scmp.eq.s32.totalorder %s23, 1
      %p119 = por %p117, %p118
      %p121 = scmp.ne.s32.totalorder %s104, %s120
      %p122 = scmp.eq.s32.totalorder %s23, 0
      %p123 = por %p121, %p122
      %p124 = scmp.le.s32.totalorder 1, %s17
      %p125 = scmp.lt.s32.totalorder %s17, 3
      %p126 = pnand %p124, %p125
      %p127 = pneg %p126
      // Predicated region
      $region9: #{tpu_custom_call.1} parent=5 // pred_check
        _
      $region10: #{tpu_custom_call.1} parent=5 // pred_check_branch
        %129 = sbr.rel (%p126) target = $region12
      $region11: #{tpu_custom_call.1} parent=5 // pred_region
        %s130 = ssub.s32 %s17, 1
        // Predicated region
        $region13: #{tpu_custom_call.1} parent=11 // pred_check
          %p131 = pneg %p64
        $region14: #{tpu_custom_call.1} parent=11 // pred_check_branch
          %133 = sbr.rel (%p131) target = $region16
        $region15: #{tpu_custom_call.1} parent=11 // pred_region
          %s135 = ssub.s32 1728, 1728
          %136 = vsyncadd [#allocation3], %s135
          %s137 = sshll.u32 [#allocation2], 4
          %s138 = int_to_ptr.vmem [resolvable:$true] %s137
          %143 = dma.hbm_to_vmem [thread:$0]  %s1, 1728, %s138, [#allocation3], 64, 64, 4
        $region16: #{tpu_custom_call.1} parent=11 // pred_fallthru
          _
      $region12: #{tpu_custom_call.1} parent=5 // pred_fallthru
        _
      %p144 = scmp.lt.s32.totalorder %s17, 2
      // Predicated region
      $region17: #{tpu_custom_call.1} parent=5 // pred_check
        %p145 = pneg %p144
      $region18: #{tpu_custom_call.1} parent=5 // pred_check_branch
        %147 = sbr.rel (%p145) target = $region20
      $region19: #{tpu_custom_call.1} parent=5 // pred_region
        // Predicated region
        $region21: #{tpu_custom_call.1} parent=19 // pred_check
          %p148 = pneg %p37
        $region22: #{tpu_custom_call.1} parent=19 // pred_check_branch
          %150 = sbr.rel (%p148) target = $region24
        $region23: #{tpu_custom_call.1} parent=19 // pred_region
          %p151 = scmp.lt.s32.totalorder %s17, 1
          %s152 = scalar_select %p151, %s17, 1
          %s153 = smul.addr %s152, 3
          %s154 = smul.addr %s153, 4
          %s155 = scalar_lea.vmem %s0, %s154
        $region24: #{tpu_custom_call.1} parent=19 // pred_fallthru
          _
      $region20: #{tpu_custom_call.1} parent=5 // pred_fallthru
        _
      %p156 = scmp.le.s32.totalorder 1, %s17
      %p157 = scmp.lt.s32.totalorder %s17, 3
      %p158 = pnand %p156, %p157
      %p159 = pneg %p158
      // Predicated region
      $region25: #{tpu_custom_call.1} parent=5 // pred_check
        _
      $region26: #{tpu_custom_call.1} parent=5 // pred_check_branch
        %161 = sbr.rel (%p158) target = $region28
      $region27: #{tpu_custom_call.1} parent=5 // pred_region
        %s162 = ssub.s32 %s17, 1
        // Predicated region
        $region29: #{tpu_custom_call.1} parent=27 // pred_check
          %p163 = pneg %p64
        $region30: #{tpu_custom_call.1} parent=27 // pred_check_branch
          %165 = sbr.rel (%p163) target = $region32
        $region31: #{tpu_custom_call.1} parent=27 // pred_region
          %166 = dma.done [#allocation3], 1728
        $region32: #{tpu_custom_call.1} parent=27 // pred_fallthru
          _
        %p167 = scmp.lt.s32.totalorder %s22, 1
        %s168 = scalar_select %p167, %s22, 1
        %s169 = smul.addr %s168, 3
        %s170 = smul.addr %s169, 4
        %s171 = scalar_lea.vmem %s0, %s170
        %p172 = pneg %p43
        %p173 = pneg %p40
        %p174 = pneg %p64
        %p175 = pneg %p61
        %p176 = pneg %p90
        %p177 = pneg %p87
        %s178 = sand.u32 %s77, 1
        %s179 = scalar_lea.sflag [#allocation4], %s178
        %s180 = sand.u32 %s77, 1
        %s181 = smul.addr %s180, 16
        %s182 = scalar_lea.vmem [#allocation5], %s181
        %p183 = pneg %p116
        %p184 = pneg %p113
        %s185 = sand.u32 %s103, 1
        %s186 = scalar_lea.sflag [#allocation7], %s185
        %s187 = sand.u32 %s103, 1
        %s188 = smul.addr %s187, 2
        %s189 = scalar_lea.vmem [#allocation6], %s188
        %p190 = scmp.lt.s32.totalorder %s22, 1
        %s191 = scalar_select %p190, %s22, 1
        %s192 = smul.addr %s191, 3
        %s193 = smul.addr %s192, 4
        %s194 = scalar_lea.vmem %s0, %s193
        %v196 = vld [vmem:[%s194] sm:$0xf]
        %v197 = vld [vmem:[%s194 + $0x4] sm:$0xf]
        %v198 = vld [vmem:[#allocation2] sm:$0xf]
        %v199 = vld [vmem:[#allocation2 + $0x4] sm:$0xf]
        %v200 = vld [vmem:[#allocation2 + $0x8] sm:$0xf]
        %v201 = vld [vmem:[#allocation2 + $0xc] sm:$0xf]
        %v202 = vld [vmem:[#allocation2 + $0x10] sm:$0xf]
        %v203 = vld [vmem:[#allocation2 + $0x14] sm:$0xf]
        %v204 = vld [vmem:[#allocation2 + $0x18] sm:$0xf]
        %v205 = vld [vmem:[#allocation2 + $0x1c] sm:$0xf]
        %v206 = vld [vmem:[#allocation2 + $0x20] sm:$0xf]
        %v207 = vld [vmem:[%s194 + $0x8] sm:$0x1]
        %s208 = scalar_lea.vmem [#allocation2], 36
        %v209 = vld [vmem:[%s208] sm:$0xf]
        %v210 = vld [vmem:[%s208 + $0x4] sm:$0xf]
        %v211 = vld [vmem:[%s208 + $0x8] sm:$0xf]
        %v212 = vld [vmem:[%s208 + $0xc] sm:$0xf]
        %v213 = vld [vmem:[%s208 + $0x10] sm:$0xf]
        %v214 = vld [vmem:[%s208 + $0x14] sm:$0xf]
        %v215 = vld [vmem:[%s208 + $0x18] sm:$0xf]
        %v216 = vld [vmem:[%s208 + $0x1c] sm:$0xf]
        %v217 = vld [vmem:[%s208 + $0x20] sm:$0xf]
        %v221 = vunpack.c.l.b16 %v196
        %v222 = vunpack.c.l.b16 %v197
        %v223 = vunpack.c.l.b16 %v207
        %v224 = vpack.c.b16 %v222, %v221
        %v225 = vpack.c.b16 %v223, %v223
        %vm226 = vsmask.f32 7424
        %v228 = vshrl.u32 %v224, 16
        %v230 = vshll.u32 %v224, 16
        %v232 = vrot.slane %v230, 1
        %v233 = vor.u32 %v228, %v232
        %v235 = vshll.u32 %v225, 16
        %v237 = vrot.slane %v235, 1
        %v238 = vsel %vm226, %v233, %v237
        %v248 = vunpack.c.l.b16 %v209
        %v249 = vunpack.c.l.b16 %v210
        %v250 = vunpack.c.l.b16 %v211
        %v251 = vunpack.c.l.b16 %v212
        %v252 = vunpack.c.l.b16 %v213
        %v253 = vunpack.c.l.b16 %v214
        %v254 = vunpack.c.l.b16 %v215
        %v255 = vunpack.c.l.b16 %v216
        %v256 = vunpack.c.l.b16 %v217
        %v257 = vpack.c.b16 %v249, %v248
        %v258 = vpack.c.b16 %v251, %v250
        %v259 = vpack.c.b16 %v253, %v252
        %v260 = vpack.c.b16 %v255, %v254
        %v261 = vpack.c.b16 %v256, %v256
        %vm266 = vcmask 588800
        %v268 = vsel %vm266, %v238, 0
        %vm270 = vcmask 1043456
        %v272 = vsel %vm270, %v261, 0
        %274 = vmatprep.subr.bf16.mxu0 0
        %275 = vmatpush1.bf16.msra.mxu0 %v257
        %276 = vmatprep.subr.bf16.mxu0 0
        %277 = vmatpush1.bf16.msra.mxu0 %v258
        %278 = vmatprep.subr.bf16.mxu0 0
        %279 = vmatpush1.bf16.msra.mxu0 %v259
        %280 = vmatprep.subr.bf16.mxu0 0
        %281 = vmatpush1.bf16.msra.mxu0 %v260
        %282 = vmatprep.subr.bf16.mxu0 0
        %283 = vmatpush1.bf16.msra.mxu0 %v272
        %284 = vmatprep.subr.bf16.mxu0 0
        %285 = vmatpush1.bf16.msra.mxu0 0
        %286 = vmatprep.subr.bf16.mxu0 0
        %287 = vmatpush1.bf16.msra.mxu0 0
        %288 = vmatprep.subr.bf16.mxu0 0
        %289 = vmatpush1.bf16.msra.mxu0 0
        %290 = vmatprep.subr.bf16.mxu0 0
        %291 = vmatpush1.bf16.msra.mxu0 0
        %292 = vmatprep.subr.bf16.mxu0 0
        %293 = vmatpush1.bf16.msra.mxu0 0
        %294 = vmatprep.subr.bf16.mxu0 0
        %295 = vmatpush1.bf16.msra.mxu0 0
        %296 = vmatprep.subr.bf16.mxu0 0
        %297 = vmatpush1.bf16.msra.mxu0 0
        %298 = vmatprep.subr.bf16.mxu0 0
        %299 = vmatpush1.bf16.msra.mxu0 0
        %300 = vmatprep.subr.bf16.mxu0 0
        %301 = vmatpush1.bf16.msra.mxu0 0
        %302 = vmatprep.subr.bf16.mxu0 0
        %303 = vmatpush1.bf16.msra.mxu0 0
        %304 = vmatprep.subr.bf16.mxu0 0
        %305 = vmatpush1.bf16.msra.mxu0 0
        %306 = vmatprep.mubr.bf16.mxu0 0
        %307 = vmatmul.mubr.bf16.gmra.mrb[0].mxu0 %v268
        %v308 = vpop.f32.mrb[0].mxu0
        %v309 = vadd.f32 0.0, %v308
        %v310 = vpop.f32.mrb[0].mxu0
        %v311 = vpop.f32.mrb[0].mxu0
        %v312 = vadd.f32 0.0, %v311
        %v313 = vpop.f32.mrb[0].mxu0
        %314 = vdwg.mxu0
        %v324 = vunpack.c.l.b16 %v198
        %v325 = vunpack.c.l.b16 %v199
        %v326 = vunpack.c.l.b16 %v200
        %v327 = vunpack.c.l.b16 %v201
        %v328 = vunpack.c.l.b16 %v202
        %v329 = vunpack.c.l.b16 %v203
        %v330 = vunpack.c.l.b16 %v204
        %v331 = vunpack.c.l.b16 %v205
        %v332 = vunpack.c.l.b16 %v206
        %v333 = vpack.c.b16 %v325, %v324
        %v334 = vpack.c.b16 %v327, %v326
        %v335 = vpack.c.b16 %v329, %v328
        %v336 = vpack.c.b16 %v331, %v330
        %v337 = vpack.c.b16 %v332, %v332
        %v342 = vsel %vm266, %v224, 0
        %v345 = vsel %vm270, %v337, 0
        %347 = vmatprep.subr.bf16.mxu0 0
        %348 = vmatpush1.bf16.msra.mxu0 %v333
        %349 = vmatprep.subr.bf16.mxu0 0
        %350 = vmatpush1.bf16.msra.mxu0 %v334
        %351 = vmatprep.subr.bf16.mxu0 0
        %352 = vmatpush1.bf16.msra.mxu0 %v335
        %353 = vmatprep.subr.bf16.mxu0 0
        %354 = vmatpush1.bf16.msra.mxu0 %v336
        %355 = vmatprep.subr.bf16.mxu0 0
        %356 = vmatpush1.bf16.msra.mxu0 %v345
        %357 = vmatprep.subr.bf16.mxu0 0
        %358 = vmatpush1.bf16.msra.mxu0 0
        %359 = vmatprep.subr.bf16.mxu0 0
        %360 = vmatpush1.bf16.msra.mxu0 0
        %361 = vmatprep.subr.bf16.mxu0 0
        %362 = vmatpush1.bf16.msra.mxu0 0
        %363 = vmatprep.subr.bf16.mxu0 0
        %364 = vmatpush1.bf16.msra.mxu0 0
        %365 = vmatprep.subr.bf16.mxu0 0
        %366 = vmatpush1.bf16.msra.mxu0 0
        %367 = vmatprep.subr.bf16.mxu0 0
        %368 = vmatpush1.bf16.msra.mxu0 0
        %369 = vmatprep.subr.bf16.mxu0 0
        %370 = vmatpush1.bf16.msra.mxu0 0
        %371 = vmatprep.subr.bf16.mxu0 0
        %372 = vmatpush1.bf16.msra.mxu0 0
        %373 = vmatprep.subr.bf16.mxu0 0
        %374 = vmatpush1.bf16.msra.mxu0 0
        %375 = vmatprep.subr.bf16.mxu0 0
        %376 = vmatpush1.bf16.msra.mxu0 0
        %377 = vmatprep.subr.bf16.mxu0 0
        %378 = vmatpush1.bf16.msra.mxu0 0
        %379 = vmatprep.mubr.bf16.mxu0 0
        %380 = vmatmul.mubr.bf16.gmra.mrb[0].mxu0 %v342
        %v381 = vpop.f32.mrb[0].mxu0
        %v382 = vadd.f32 %v309, %v381
        %v383 = vpop.f32.mrb[0].mxu0
        %v384 = vpop.f32.mrb[0].mxu0
        %v385 = vadd.f32 %v312, %v384
        %v386 = vpop.f32.mrb[0].mxu0
        %387 = vdwg.mxu0
        %v388 = vld [vmem:[%s194] sm:$0xe]
        %s389 = scalar_lea.vmem [#allocation2], 72
        %v390 = vld [vmem:[%s389] sm:$0xf]
        %v391 = vld [vmem:[%s389 + $0x4] sm:$0xf]
        %v392 = vld [vmem:[%s389 + $0x8] sm:$0xf]
        %v393 = vld [vmem:[%s389 + $0xc] sm:$0xf]
        %v394 = vld [vmem:[%s389 + $0x10] sm:$0xf]
        %v395 = vld [vmem:[%s389 + $0x14] sm:$0xf]
        %v396 = vld [vmem:[%s389 + $0x18] sm:$0xf]
        %v397 = vld [vmem:[%s389 + $0x1c] sm:$0xf]
        %v398 = vld [vmem:[%s389 + $0x20] sm:$0xf]
        %v400 = vunpack.c.l.b16 %v388
        %v401 = vpack.c.b16 %v222, %v400
        %vm402 = vcmask 1046528
        %v403 = vrot.slane %v401, 1
        %v404 = vrot.slane %v225, 1
        %v405 = vsel %vm402, %v403, %v404
        %v415 = vunpack.c.l.b16 %v390
        %v416 = vunpack.c.l.b16 %v391
        %v417 = vunpack.c.l.b16 %v392
        %v418 = vunpack.c.l.b16 %v393
        %v419 = vunpack.c.l.b16 %v394
        %v420 = vunpack.c.l.b16 %v395
        %v421 = vunpack.c.l.b16 %v396
        %v422 = vunpack.c.l.b16 %v397
        %v423 = vunpack.c.l.b16 %v398
        %v424 = vpack.c.b16 %v416, %v415
        %v425 = vpack.c.b16 %v418, %v417
        %v426 = vpack.c.b16 %v420, %v419
        %v427 = vpack.c.b16 %v422, %v421
        %v428 = vpack.c.b16 %v423, %v423
        %v434 = vsel %vm266, %v405, 0
        %v437 = vsel %vm270, %v428, 0
        %439 = vmatprep.subr.bf16.mxu0 0
        %440 = vmatpush1.bf16.msra.mxu0 %v424
        %441 = vmatprep.subr.bf16.mxu0 0
        %442 = vmatpush1.bf16.msra.mxu0 %v425
        %443 = vmatprep.subr.bf16.mxu0 0
        %444 = vmatpush1.bf16.msra.mxu0 %v426
        %445 = vmatprep.subr.bf16.mxu0 0
        %446 = vmatpush1.bf16.msra.mxu0 %v427
        %447 = vmatprep.subr.bf16.mxu0 0
        %448 = vmatpush1.bf16.msra.mxu0 %v437
        %449 = vmatprep.subr.bf16.mxu0 0
        %450 = vmatpush1.bf16.msra.mxu0 0
        %451 = vmatprep.subr.bf16.mxu0 0
        %452 = vmatpush1.bf16.msra.mxu0 0
        %453 = vmatprep.subr.bf16.mxu0 0
        %454 = vmatpush1.bf16.msra.mxu0 0
        %455 = vmatprep.subr.bf16.mxu0 0
        %456 = vmatpush1.bf16.msra.mxu0 0
        %457 = vmatprep.subr.bf16.mxu0 0
        %458 = vmatpush1.bf16.msra.mxu0 0
        %459 = vmatprep.subr.bf16.mxu0 0
        %460 = vmatpush1.bf16.msra.mxu0 0
        %461 = vmatprep.subr.bf16.mxu0 0
        %462 = vmatpush1.bf16.msra.mxu0 0
        %463 = vmatprep.subr.bf16.mxu0 0
        %464 = vmatpush1.bf16.msra.mxu0 0
        %465 = vmatprep.subr.bf16.mxu0 0
        %466 = vmatpush1.bf16.msra.mxu0 0
        %467 = vmatprep.subr.bf16.mxu0 0
        %468 = vmatpush1.bf16.msra.mxu0 0
        %469 = vmatprep.subr.bf16.mxu0 0
        %470 = vmatpush1.bf16.msra.mxu0 0
        %471 = vmatprep.mubr.bf16.mxu0 0
        %472 = vmatmul.mubr.bf16.gmra.mrb[0].mxu0 %v434
        %v473 = vpop.f32.mrb[0].mxu0
        %v474 = vadd.f32 0.0, %v473
        %v475 = vpop.f32.mrb[0].mxu0
        %v476 = vpop.f32.mrb[0].mxu0
        %v477 = vadd.f32 0.0, %v476
        %v478 = vpop.f32.mrb[0].mxu0
        %479 = vdwg.mxu0
        %v480 = vadd.f32 %v382, %v474
        %v481 = vadd.f32 %v385, %v477
        %482 = vst [vmem:[%s182] sm:$0xff] %v480
        %483 = vst [vmem:[%s182 + $0x8] sm:$0xff] %v481
        %v484 = vadd.f32 %v480, %v481
        %v485 = vrot.slane %v484, 4
        %v486 = vadd.f32 %v484, %v485
        %v487 = vrot.slane %v486, 2
        %v488 = vadd.f32 %v486, %v487
        %v489 = vrot.slane %v488, 1
        %v490 = vadd.f32 %v488, %v489
        %v491 = vmul.f32 %v480, %v480
        %v492 = vmul.f32 %v481, %v481
        %v493 = vadd.f32 %v491, %v492
        %v494 = vrot.slane %v493, 4
        %v495 = vadd.f32 %v493, %v494
        %v496 = vrot.slane %v495, 2
        %v497 = vadd.f32 %v495, %v496
        %v498 = vrot.slane %v497, 1
        %v499 = vadd.f32 %v497, %v498
        %vm500 = vcmask 1040384
        %v501 = vsel %vm500, %v490, %v499
        %502 = vst [vmem:[%s189] sm:$0x3] %v501
        %s503 = sand.u32 %s77, 1
        %s504 = scalar_lea.sflag [#allocation4], %s503
        %s505 = sand.u32 %s77, 1
        %s506 = smul.addr %s505, 16
        %s507 = scalar_lea.vmem [#allocation5], %s506
        %s508 = sand.u32 %s103, 1
        %s509 = scalar_lea.sflag [#allocation7], %s508
        %s510 = sand.u32 %s103, 1
        %s511 = smul.addr %s510, 2
        %s512 = scalar_lea.vmem [#allocation6], %s511
        // Predicated region
        $region33: #{tpu_custom_call.1} parent=27 // pred_check
          %p513 = pneg %p87
        $region34: #{tpu_custom_call.1} parent=27 // pred_check_branch
          %515 = sbr.rel (%p513) target = $region36
        $region35: #{tpu_custom_call.1} parent=27 // pred_region
          %s517 = ssub.s32 256, 256
          %518 = vsyncadd %s504, %s517
          %s519 = smul.addr %s22, 2
          %s520 = smul.addr %s519, 128
          %s521 = scalar_lea.hbm %s2, %s520
          %s522 = sshll.u32 %s507, 4
          %s523 = int_to_ptr.vmem [resolvable:$true] %s522
          %528 = dma.vmem_to_hbm [thread:$0]  %s523, 256, %s521, %s504, 128, 128, 8
        $region36: #{tpu_custom_call.1} parent=27 // pred_fallthru
          _
        // Predicated region
        $region37: #{tpu_custom_call.1} parent=27 // pred_check
          %p529 = pneg %p113
        $region38: #{tpu_custom_call.1} parent=27 // pred_check_branch
          %531 = sbr.rel (%p529) target = $region40
        $region39: #{tpu_custom_call.1} parent=27 // pred_region
          %s533 = ssub.s32 32, 32
          %534 = vsyncadd %s509, %s533
          %s535 = smul.addr %s22, 32
          %s536 = scalar_lea.hbm %s3, %s535
          %s538 = sshll.u32 %s512, 4
          %s539 = int_to_ptr.vmem [resolvable:$true] %s538
          %541 = dma.vmem_to_hbm [thread:$0]  %s539, 32, %s536, %s509
        $region40: #{tpu_custom_call.1} parent=27 // pred_fallthru
          _
      $region28: #{tpu_custom_call.1} parent=5 // pred_fallthru
        _
      %p542 = scmp.le.s32.totalorder 2, %s17
      // Predicated region
      $region41: #{tpu_custom_call.1} parent=5 // pred_check
        %p543 = pneg %p542
      $region42: #{tpu_custom_call.1} parent=5 // pred_check_branch
        %545 = sbr.rel (%p543) target = $region44
      $region43: #{tpu_custom_call.1} parent=5 // pred_region
        %s546 = ssub.s32 %s17, 2
        // Predicated region
        $region45: #{tpu_custom_call.1} parent=43 // pred_check
          %p547 = pneg %p93
        $region46: #{tpu_custom_call.1} parent=43 // pred_check_branch
          %549 = sbr.rel (%p547) target = $region48
        $region47: #{tpu_custom_call.1} parent=43 // pred_region
          %s550 = sand.u32 %s78, 1
          %s551 = scalar_lea.sflag [#allocation4], %s550
          %s552 = sand.u32 %s78, 1
          %s553 = smul.addr %s552, 16
          %s554 = scalar_lea.vmem [#allocation5], %s553
          %555 = dma.done %s551, 256
        $region48: #{tpu_custom_call.1} parent=43 // pred_fallthru
          _
        // Predicated region
        $region49: #{tpu_custom_call.1} parent=43 // pred_check
          %p556 = pneg %p119
        $region50: #{tpu_custom_call.1} parent=43 // pred_check_branch
          %558 = sbr.rel (%p556) target = $region52
        $region51: #{tpu_custom_call.1} parent=43 // pred_region
          %s559 = sand.u32 %s104, 1
          %s560 = scalar_lea.sflag [#allocation7], %s559
          %s561 = sand.u32 %s104, 1
          %s562 = smul.addr %s561, 2
          %s563 = scalar_lea.vmem [#allocation6], %s562
          %564 = dma.done %s560, 32
        $region52: #{tpu_custom_call.1} parent=43 // pred_fallthru
          _
      $region44: #{tpu_custom_call.1} parent=5 // pred_fallthru
        _
    $region6: #{tpu_custom_call.1} parent=1 // loop_footer
      %s21 = sadd.s32 1, %s17
    $region7: #{tpu_custom_call.1} parent=1 // loop_footer_branch
      %16 = sbr.rel target = $region3
    $region8: #{tpu_custom_call.1} parent=1 // loop_exit
      _
    %565 = vsyncpa [#allocation3], 1
    %s566 = scalar_lea.sflag [#allocation3], 1
    %567 = vsyncpa %s566, 1
    %568 = vsyncpa [#allocation4], 1
    %s569 = scalar_lea.sflag [#allocation4], 1
    %570 = vsyncpa %s569, 1
    %571 = vsyncpa [#allocation7], 1
    %s572 = scalar_lea.sflag [#allocation7], 1
    %573 = vsyncpa %s572, 1

</llo_original>
